<compile_context>
chip_gen: v7x
topology: tpu7x:2x2x1
jax: 0.10.0
libtpu: 0.0.40
codegen_flags: <defaults>
</compile_context>

<pallas_src>
import functools

import jax
import jax.numpy as jnp
import numpy as np
from jax.experimental import pallas as pl
from jax.experimental.pallas import tpu as pltpu

_LANES = 128
# 2048 rows x 128 lanes x 4 B = 1 MiB per f32 stream per tile; x3 streams,
# double-buffered ~6 MiB VMEM.  (4096 also fits and is slightly better on v7x.)
_MAX_TILE_ROWS = 2048


def _reward_sum_kernel(inp_ref, seq_ref, rew_ref, out_ref, *,
                       total_rows, need_row_mask):
    """One grid step = one (tile_rows, 128) slab of the flattened token stream.

    Writes the per-tile partial sum of  input * reward * [(seq!=0)&(seq!=2)]
    as a (1, 1, 128) lane vector.  Sign and the 1/B scaling are applied in the
    plain-JAX wrapper, together with the LB / stop-sign scalar terms.
    """
    inp = inp_ref[...].astype(jnp.float32)   # bf16 inputs up-cast per tile
    rew = rew_ref[...].astype(jnp.float32)
    s = seq_ref[...]

    valid = jnp.logical_and(s != 0, s != 2)
    if need_row_mask:
        # The last tile extends past the real array: its un-DMA'd rows hold
        # stale VMEM garbage, so mask them out by global row index.
        tile_rows = inp.shape[0]
        row_ids = (pl.program_id(0) * tile_rows
                   + jax.lax.broadcasted_iota(jnp.int32, inp.shape, 0))
        valid = jnp.logical_and(valid, row_ids < total_rows)

    # where-select (not mask-multiply): one select per element, and garbage
    # (even NaN/Inf) in masked slots cannot propagate.
    terms = jnp.where(valid, inp * rew, jnp.float32(0.0))
    partial = jnp.sum(terms, axis=0, keepdims=True)           # (1, 128)
    out_ref[...] = partial.reshape(1, 1, _LANES)


def reward_criterion(inp, seq, reward, LB, loss_stop_sign):
    """Returns (loss_all, 0.01*LB_all, 5*stop_all, loss_self_cri), like the torch module."""
    B = seq.shape[0]

    # Flatten to 1-D token streams (the torch .view(-1)).
    inp_f = inp.reshape(-1)
    rew_f = reward.reshape(-1)
    seq_f = seq.reshape(-1)
    M = inp_f.shape[0]

    rows = -(-M // _LANES)
    padded = rows * _LANES
    if padded != M:
        # Slow path only for non-128-divisible token counts; padded seq == 0
        # -> masked, so padding never contributes.  (Divisible shapes skip the
        # pad copy entirely: the reshape below is a free bitcast.)
        pad = padded - M
        inp_f = jnp.pad(inp_f, (0, pad))
        rew_f = jnp.pad(rew_f, (0, pad))
        seq_f = jnp.pad(seq_f, (0, pad))
    inp2 = inp_f.reshape(rows, _LANES)
    rew2 = rew_f.reshape(rows, _LANES)
    seq2 = seq_f.reshape(rows, _LANES)

    # Whole-array tile when it fits, else 2048-row tiles with an in-kernel
    # row mask for the final (non-divisible) edge tile.
    tile_rows = rows if rows <= _MAX_TILE_ROWS else _MAX_TILE_ROWS
    num_tiles = -(-rows // tile_rows)
    need_row_mask = (rows % tile_rows) != 0

    row_spec = pl.BlockSpec((tile_rows, _LANES), lambda i: (i, 0))
    kernel = functools.partial(_reward_sum_kernel,
                               total_rows=rows, need_row_mask=need_row_mask)

    partials = pl.pallas_call(
        kernel,
        out_shape=jax.ShapeDtypeStruct((num_tiles, 1, _LANES), jnp.float32),
        grid=(num_tiles,),
        in_specs=[row_spec, row_spec, row_spec],   # input, seq, reward
        out_specs=pl.BlockSpec((1, 1, _LANES), lambda i: (i, 0, 0)),
        compiler_params=pltpu.CompilerParams(
            dimension_semantics=("parallel",),     # shards tiles across TCs (v7x)
            vmem_limit_bytes=32 * 1024 * 1024),
    )(inp2, seq2, rew2)

    # Tiny scalar finalize stays in plain JAX: sum the per-tile partials, apply
    # the folded -1/B, and combine with the LB / stop-sign means.
    loss_self_cri = -jnp.sum(partials) / jnp.float32(B)
    lb_all = jnp.mean(LB.astype(jnp.float32))
    stop_all = jnp.mean(loss_stop_sign.astype(jnp.float32))
    loss_all = -0.01 * lb_all - 5.0 * stop_all + loss_self_cri
    return loss_all, 0.01 * lb_all, 5.0 * stop_all, loss_self_cri


def _reference(inp, seq, reward, LB, loss_stop_sign):
    B = seq.shape[0]
    mask = jnp.logical_and(seq != 0, seq != 2).astype(jnp.float32).reshape(-1)
    output = (-inp.reshape(-1).astype(jnp.float32)
              * reward.reshape(-1).astype(jnp.float32) * mask)
    loss_self_cri = jnp.sum(output) / B
    lb_all = jnp.mean(LB.astype(jnp.float32))
    stop_all = jnp.mean(loss_stop_sign.astype(jnp.float32))
    loss_all = -0.01 * lb_all - 5.0 * stop_all + loss_self_cri
    return loss_all, 0.01 * lb_all, 5.0 * stop_all, loss_self_cri


def _check(inp, seq, reward, LB, stop, rtol=1e-5, atol=1e-4):
    got = jax.block_until_ready(reward_criterion(inp, seq, reward, LB, stop))
    want = _reference(inp, seq, reward, LB, stop)
    for g, w in zip(got, want):
        np.testing.assert_allclose(np.asarray(g), np.asarray(w), rtol=rtol, atol=atol)


if __name__ == "__main__":
    key = jax.random.PRNGKey(0)

    # 1) Small shapes consistent with the module (batch=2, sampled length=16):
    #    exercises the (tiny) pad path and a single whole-array tile.
    B, L, S = 2, 16, 4
    k1, k2, k3, k4, k5 = jax.random.split(key, 5)
    inp = jax.random.normal(k1, (B, L), dtype=jnp.float32)         # per-word log-probs
    seq = jax.random.randint(k2, (B, L), 0, 10, dtype=jnp.int32)   # token ids (0 / 2 masked)
    reward = jax.random.normal(k3, (B, L), dtype=jnp.float32)
    LB = jax.random.normal(k4, (B, S), dtype=jnp.float32)
    loss_stop_sign = jax.random.normal(k5, (B, S), dtype=jnp.float32)
    _check(inp, seq, reward, LB, loss_stop_sign)

    # 2) Larger, 128-divisible shape: no-pad fast path, multiple 2048-row tiles.
    B2, L2, S2 = 64, 8192, 6
    k1, k2, k3, k4, k5 = jax.random.split(jax.random.PRNGKey(1), 5)
    inp_l = jax.random.normal(k1, (B2, L2), dtype=jnp.float32)
    seq_l = jax.random.randint(k2, (B2, L2), 0, 10, dtype=jnp.int32)
    reward_l = jax.random.normal(k3, (B2, L2), dtype=jnp.float32)
    LB_l = jax.random.normal(k4, (B2, S2), dtype=jnp.float32)
    stop_l = jax.random.normal(k5, (B2, S2), dtype=jnp.float32)
    _check(inp_l, seq_l, reward_l, LB_l, stop_l, rtol=1e-4, atol=1e-3)

    # 3) Non-tile-divisible row count: exercises the in-kernel edge-row mask
    #    (rows = 33*8192/128 = 2112, tile = 2048).  Also streams bf16 inputs
    #    (half the HBM bytes; kernel up-casts per tile).
    B3, L3, S3 = 33, 8192, 5
    k1, k2, k3, k4, k5 = jax.random.split(jax.random.PRNGKey(2), 5)
    inp_m = jax.random.normal(k1, (B3, L3), dtype=jnp.bfloat16)
    seq_m = jax.random.randint(k2, (B3, L3), 0, 10, dtype=jnp.int32)
    reward_m = jax.random.normal(k3, (B3, L3), dtype=jnp.bfloat16)
    LB_m = jax.random.normal(k4, (B3, S3), dtype=jnp.float32)
    stop_m = jax.random.normal(k5, (B3, S3), dtype=jnp.float32)
    _check(inp_m, seq_m, reward_m, LB_m, stop_m, rtol=1e-3, atol=1e-2)

    print("KERNEL_OK")
</pallas_src>

<mosaic_0001>
module attributes {stable_mosaic.version = 11 : i64} {
  func.func @_reward_sum_kernel(%arg0: i32, %arg1: memref<1x128xf32, #tpu.memory_space<vmem>>, %arg2: memref<1x128xi32, #tpu.memory_space<vmem>>, %arg3: memref<1x128xf32, #tpu.memory_space<vmem>>, %arg4: memref<1x1x128xf32, #tpu.memory_space<vmem>>) attributes {dimension_semantics = [#tpu.dimension_semantics<parallel>], iteration_bounds = array<i64: 1>, scalar_prefetch = 0 : i64, scratch_operands = 0 : i64, tpu.core_type = #tpu.core_type<tc>, window_params = [{transform_indices = @transform_0, window_bounds = array<i64: 1, 128>}, {transform_indices = @transform_1, window_bounds = array<i64: 1, 128>}, {transform_indices = @transform_2, window_bounds = array<i64: 1, 128>}, {transform_indices = @transform_3, window_bounds = array<i64: 1, 1, 128>}]} {
    %c0 = arith.constant 0 : index
    %c0_0 = arith.constant 0 : index
    %0 = vector.load %arg1[%c0, %c0_0] : memref<1x128xf32, #tpu.memory_space<vmem>>, vector<1x128xf32>
    %c0_1 = arith.constant 0 : index
    %c0_2 = arith.constant 0 : index
    %1 = vector.load %arg3[%c0_1, %c0_2] : memref<1x128xf32, #tpu.memory_space<vmem>>, vector<1x128xf32>
    %c0_3 = arith.constant 0 : index
    %c0_4 = arith.constant 0 : index
    %2 = vector.load %arg2[%c0_3, %c0_4] : memref<1x128xi32, #tpu.memory_space<vmem>>, vector<1x128xi32>
    %c0_i32 = arith.constant 0 : i32
    %3 = vector.broadcast %c0_i32 : i32 to vector<1x128xi32>
    %4 = arith.cmpi ne, %2, %3 : vector<1x128xi32>
    %c2_i32 = arith.constant 2 : i32
    %5 = vector.broadcast %c2_i32 : i32 to vector<1x128xi32>
    %6 = arith.cmpi ne, %2, %5 : vector<1x128xi32>
    %7 = arith.andi %4, %6 : vector<1x128xi1>
    %8 = arith.mulf %0, %1 : vector<1x128xf32>
    %cst = arith.constant 0.000000e+00 : f32
    %9 = vector.broadcast %cst : f32 to vector<1x128xf32>
    %10 = arith.select %7, %8, %9 : vector<1x128xi1>, vector<1x128xf32>
    %cst_5 = arith.constant dense<0.000000e+00> : vector<128xf32>
    %11 = vector.multi_reduction <add>, %10, %cst_5 [0] : vector<1x128xf32> to vector<128xf32>
    %12 = vector.shape_cast %11 : vector<128xf32> to vector<1x128xf32>
    %13 = vector.shape_cast %12 : vector<1x128xf32> to vector<1x1x128xf32>
    %c0_6 = arith.constant 0 : index
    %c0_7 = arith.constant 0 : index
    %c0_8 = arith.constant 0 : index
    %14 = vector.load %arg4[%c0_6, %c0_7, %c0_8] : memref<1x1x128xf32, #tpu.memory_space<vmem>>, vector<1x1x128xf32>
    tpu.vector_store %arg4[%c0_6, %c0_7, %c0_8], %13 {strides = array<i32>} : memref<1x1x128xf32, #tpu.memory_space<vmem>>, vector<1x1x128xf32>,
    return
  }
  func.func @transform_0(%arg0: i32) -> (i32, i32) {
    %c0_i32 = arith.constant 0 : i32
    %c0_i32_0 = arith.constant 0 : i32
    return %arg0, %c0_i32 : i32, i32
  }
  func.func @transform_1(%arg0: i32) -> (i32, i32) {
    %c0_i32 = arith.constant 0 : i32
    %c0_i32_0 = arith.constant 0 : i32
    return %arg0, %c0_i32 : i32, i32
  }
  func.func @transform_2(%arg0: i32) -> (i32, i32) {
    %c0_i32 = arith.constant 0 : i32
    %c0_i32_0 = arith.constant 0 : i32
    return %arg0, %c0_i32 : i32, i32
  }
  func.func @transform_3(%arg0: i32) -> (i32, i32, i32) {
    %c0_i32 = arith.constant 0 : i32
    %c0_i32_0 = arith.constant 0 : i32
    %c0_i32_1 = arith.constant 0 : i32
    return %arg0, %c0_i32, %c0_i32_0 : i32, i32, i32
  }
}

</mosaic_0001>

<llo_original>
// kernel: tpu_custom_call.1
$region0: #{tpu_custom_call.1}
  #allocation0 [shape = 'u32[]', space=smem, size = 0x4, offset = 0x4, fixed_abs, tag = 'smem constant byte address 0x4 - core index']
  #allocation1 [shape = 'u32[144,128]{1,0:T(1,128)}', space=vmem, size = 0x12000, scoped, tag = 'internal scratch']
  %s0 = inlined_call_operand.hbm [shape: f32[1,128], index: 0, kind: input, shape index: {}]
  %s1 = inlined_call_operand.vmem [shape: s32[1,128], index: 1, kind: input, shape index: {}]
  %s2 = inlined_call_operand.vmem [shape: f32[1,128], index: 2, kind: input, shape index: {}]
  %s3 = inlined_call_operand.hbm [shape: f32[1,1,128], index: 3, kind: output, shape index: {}]
  %s4 = sld [smem:[#allocation0]]
  $region26: #{tpu_custom_call.1} parent=0
    _
  %s6 = ssub.s32 1, %s4
  %s7 = scalar_select 0, %s6, %s4
  $region1: #{tpu_custom_call.1} parent=0
    #allocation2 [shape = 'u8[512]{0}', space=vmem, size = 0x400, scoped, tag = 'input window, operand 0, single buffered']
    #allocation3 [shape = 's32[1]{0}', space=sflag, size = 0x4, scoped, tag = 'scoped memory for tpu_custom_call.1']
    #allocation4 [shape = 's32[1]{0}', space=sflag, size = 0x4, scoped, tag = 'scoped memory for tpu_custom_call.1']
    #allocation5 [shape = 'u8[512]{0}', space=vmem, size = 0x400, scoped, tag = 'output window, operand 0, single buffered']
    %8 = vsyncpa [#allocation3], 0
    %9 = vsyncpa [#allocation4], 0
    // Predicated region
    $region2: #{tpu_custom_call.1} parent=1 // pred_check
      _
    $region3: #{tpu_custom_call.1} parent=1 // pred_check_branch
      %11 = sbr.rel (0) target = $region5
    $region4: #{tpu_custom_call.1} parent=1 // pred_region
      %s13 = ssub.s32 16, 16
      %14 = vsyncadd [#allocation3], %s13
      %s16 = sshll.u32 [#allocation2], 4
      %s17 = int_to_ptr.vmem [resolvable:$true] %s16
      %19 = dma.hbm_to_vmem [thread:$0]  %s0, 16, %s17, [#allocation3]
    $region5: #{tpu_custom_call.1} parent=1 // pred_fallthru
      _
    // Predicated region
    $region6: #{tpu_custom_call.1} parent=1 // pred_check
      _
    $region7: #{tpu_custom_call.1} parent=1 // pred_check_branch
      %21 = sbr.rel (0) target = $region9
    $region8: #{tpu_custom_call.1} parent=1 // pred_region
      _
    $region9: #{tpu_custom_call.1} parent=1 // pred_fallthru
      _
    // Predicated region
    $region10: #{tpu_custom_call.1} parent=1 // pred_check
      _
    $region11: #{tpu_custom_call.1} parent=1 // pred_check_branch
      %23 = sbr.rel (0) target = $region13
    $region12: #{tpu_custom_call.1} parent=1 // pred_region
      _
    $region13: #{tpu_custom_call.1} parent=1 // pred_fallthru
      _
    // Predicated region
    $region14: #{tpu_custom_call.1} parent=1 // pred_check
      _
    $region15: #{tpu_custom_call.1} parent=1 // pred_check_branch
      %25 = sbr.rel (0) target = $region17
    $region16: #{tpu_custom_call.1} parent=1 // pred_region
      %26 = dma.done [#allocation3], 16
    $region17: #{tpu_custom_call.1} parent=1 // pred_fallthru
      _
    %v27 = vld [vmem:[#allocation2] sm:$0x1]
    %v28 = vld [vmem:[%s2] sm:$0x1]
    %v29 = vld [vmem:[%s1] sm:$0x1]
    %vm30 = vcmp.ne.s32.totalorder %v29, 0
    %vm31 = vcmp.ne.s32.totalorder %v29, 2
    %vm32 = vmand %vm30, %vm31
    %v33 = vmul.f32 %v27, %v28
    %v34 = vsel %vm32, %v33, 0.0
    %v35 = vadd.f32 %v34, 0.0
    %36 = vst [vmem:[#allocation5] sm:$0x1] %v35
    // Predicated region
    $region18: #{tpu_custom_call.1} parent=1 // pred_check
      _
    $region19: #{tpu_custom_call.1} parent=1 // pred_check_branch
      %38 = sbr.rel (0) target = $region21
    $region20: #{tpu_custom_call.1} parent=1 // pred_region
      %s40 = ssub.s32 16, 16
      %41 = vsyncadd [#allocation4], %s40
      %s43 = sshll.u32 [#allocation5], 4
      %s44 = int_to_ptr.vmem [resolvable:$true] %s43
      %46 = dma.vmem_to_hbm [thread:$0]  %s44, 16, %s3, [#allocation4]
    $region21: #{tpu_custom_call.1} parent=1 // pred_fallthru
      _
    // Predicated region
    $region22: #{tpu_custom_call.1} parent=1 // pred_check
      _
    $region23: #{tpu_custom_call.1} parent=1 // pred_check_branch
      %48 = sbr.rel (0) target = $region25
    $region24: #{tpu_custom_call.1} parent=1 // pred_region
      %49 = dma.done [#allocation4], 16
    $region25: #{tpu_custom_call.1} parent=1 // pred_fallthru
      _
    %50 = vsyncpa [#allocation3], 1
    %51 = vsyncpa [#allocation4], 1

</llo_original>
